<compile_context>
chip_gen: v7x
topology: tpu7x:2x2x1
jax: 0.10.0
libtpu: 0.0.40
codegen_flags: <defaults>
</compile_context>

<pallas_src>
import functools

import jax
import jax.numpy as jnp
from jax.experimental import pallas as pl
from jax.experimental.pallas import tpu as pltpu

_LANE = 128      # lane width: pad feature dims to multiples of this
_SUBLANE = 8     # sublane width: pad batch to multiples of this
_MAX_BATCH_TILE = 256   # batch tile cap (keeps activations well inside VMEM)


def _round_up(x, m):
    return (x + m - 1) // m * m


def _fused_mlp_kernel(*refs):
    """refs = (x_ref, w0, b0, w1, b1, ..., o_ref). All tiles resident in VMEM."""
    x_ref = refs[0]
    o_ref = refs[-1]
    wb_refs = refs[1:-1]
    n_layer = len(wb_refs) // 2

    h = x_ref[...]
    # Unrolled at trace time; intermediates stay in vregs / compiler-managed VMEM.
    for i in range(n_layer):
        w = wb_refs[2 * i][...]
        b = wb_refs[2 * i + 1][...]
        h = jnp.dot(h, w, preferred_element_type=jnp.float32) + b
    o_ref[...] = h.astype(o_ref.dtype)


def fused_mlp(x_pad, flat_params, out_pad, out_dtype):
    """One Pallas call for the whole MLP, tiled over the (padded) batch axis.

    x_pad: (Bp, INp) lane/sublane padded input.
    flat_params: [w0_pad, b0_pad, w1_pad, b1_pad, ...]; w: (Kp, Np), b: (1, Np).
    """
    Bp, in_pad = x_pad.shape

    # Pick a batch tile: whole batch if small, else fixed cap (Bp is re-padded by caller).
    tb = Bp if Bp <= _MAX_BATCH_TILE else _MAX_BATCH_TILE
    assert Bp % tb == 0
    grid = (Bp // tb,)

    # Input / output: tiled over batch. Weights / biases: constant index_map ->
    # fetched once, stay resident in VMEM across all batch tiles.
    in_specs = [pl.BlockSpec((tb, in_pad), lambda i: (i, 0))]
    for p in flat_params:
        r, c = p.shape
        in_specs.append(pl.BlockSpec((r, c), lambda i: (0, 0)))
    out_specs = pl.BlockSpec((tb, out_pad), lambda i: (i, 0))

    return pl.pallas_call(
        _fused_mlp_kernel,
        out_shape=jax.ShapeDtypeStruct((Bp, out_pad), out_dtype),
        grid_spec=pltpu.PrefetchScalarGridSpec(
            num_scalar_prefetch=0,
            grid=grid,
            in_specs=in_specs,
            out_specs=out_specs,
        ),
        compiler_params=pltpu.CompilerParams(
            dimension_semantics=("parallel",),
        ),
    )(x_pad, *flat_params)


@functools.partial(jax.jit, static_argnums=(2, 3, 4))
def _forward_jit(x, flat_params, in_dim, out_dim, dtype):
    B = x.shape[0]
    in_pad = flat_params[0].shape[0]
    out_pad = flat_params[-1].shape[1]

    # Batch padding: to sublane multiple, and to the tile size if batch is large.
    Bp = _round_up(B, _SUBLANE)
    if Bp > _MAX_BATCH_TILE:
        Bp = _round_up(Bp, _MAX_BATCH_TILE)

    # Zero-pad the input; zero rows/cols contribute exactly zero, so the valid
    # [:B, :out_dim] slab is bit-identical to the unpadded math.
    x_pad = jnp.zeros((Bp, in_pad), dtype).at[:B, :in_dim].set(x.astype(dtype))
    y_pad = fused_mlp(x_pad, flat_params, out_pad, dtype)
    return y_pad[:B, :out_dim]


class MLPBlockPallas:
    """Mirrors MLPBLOCK: a stack of Linear layers applied sequentially, no activations."""

    def __init__(self, n_units, key, dtype=jnp.float32):
        self.n_units = list(n_units)
        self.n_layer = len(n_units) - 1
        self.dtype = dtype
        self.params = []        # unpadded (W, b) — used by the pure-JAX reference
        flat = []               # lane-padded [w0, b0, w1, b1, ...] — used by the kernel
        for i in range(self.n_layer):
            fan_in, fan_out = n_units[i], n_units[i + 1]
            key, kw, kb = jax.random.split(key, 3)
            bound = 1.0 / float(fan_in) ** 0.5
            # PyTorch nn.Linear default init: U(-1/sqrt(fan_in), 1/sqrt(fan_in))
            w = jax.random.uniform(kw, (fan_in, fan_out), jnp.float32, -bound, bound)
            b = jax.random.uniform(kb, (fan_out,), jnp.float32, -bound, bound)
            self.params.append((w, b))

            fin_p = _round_up(fan_in, _LANE)
            fout_p = _round_up(fan_out, _LANE)
            w_p = jnp.zeros((fin_p, fout_p), dtype).at[:fan_in, :fan_out].set(w.astype(dtype))
            b_p = jnp.zeros((1, fout_p), dtype).at[:, :fan_out].set(b.astype(dtype))
            flat.append(w_p)
            flat.append(b_p)
        self.flat_params = tuple(flat)

    def __call__(self, x):
        B, in_dim = x.shape
        assert in_dim == self.n_units[0]
        return _forward_jit(x, self.flat_params, in_dim, self.n_units[-1], self.dtype)


def reference_forward(params, x):
    for w, b in params:
        x = x @ w + b[None, :]
    return x


if __name__ == "__main__":
    key = jax.random.PRNGKey(0)
    n_units = [32, 64, 128, 16]   # 3 Linear layers
    batch = 8

    key, kx, kp = jax.random.split(key, 3)
    x = jax.random.normal(kx, (batch, n_units[0]), jnp.float32)

    model = MLPBlockPallas(n_units, kp)

    y = model(x)
    y = jax.block_until_ready(y)

    y_ref = reference_forward(model.params, x)
    assert y.shape == (batch, n_units[-1])
    assert jnp.allclose(y, y_ref, atol=1e-4, rtol=1e-4), "mismatch vs reference"

    print("KERNEL_OK")
</pallas_src>

<mosaic_0001>
module attributes {stable_mosaic.version = 11 : i64} {
  func.func @_fused_mlp_kernel(%arg0: i32, %arg1: memref<8x128xf32, #tpu.memory_space<vmem>>, %arg2: memref<128x128xf32, #tpu.memory_space<vmem>>, %arg3: memref<1x128xf32, #tpu.memory_space<vmem>>, %arg4: memref<128x128xf32, #tpu.memory_space<vmem>>, %arg5: memref<1x128xf32, #tpu.memory_space<vmem>>, %arg6: memref<128x128xf32, #tpu.memory_space<vmem>>, %arg7: memref<1x128xf32, #tpu.memory_space<vmem>>, %arg8: memref<8x128xf32, #tpu.memory_space<vmem>>) attributes {dimension_semantics = [#tpu.dimension_semantics<parallel>], iteration_bounds = array<i64: 1>, scalar_prefetch = 0 : i64, scratch_operands = 0 : i64, tpu.core_type = #tpu.core_type<tc>, window_params = [{transform_indices = @transform_0, window_bounds = array<i64: 8, 128>}, {pipeline_mode = #tpu.pipeline_mode<synchronous>, transform_indices = @transform_1, window_bounds = array<i64: 128, 128>}, {pipeline_mode = #tpu.pipeline_mode<synchronous>, transform_indices = @transform_2, window_bounds = array<i64: 1, 128>}, {pipeline_mode = #tpu.pipeline_mode<synchronous>, transform_indices = @transform_3, window_bounds = array<i64: 128, 128>}, {pipeline_mode = #tpu.pipeline_mode<synchronous>, transform_indices = @transform_4, window_bounds = array<i64: 1, 128>}, {pipeline_mode = #tpu.pipeline_mode<synchronous>, transform_indices = @transform_5, window_bounds = array<i64: 128, 128>}, {pipeline_mode = #tpu.pipeline_mode<synchronous>, transform_indices = @transform_6, window_bounds = array<i64: 1, 128>}, {transform_indices = @transform_7, window_bounds = array<i64: 8, 128>}]} {
    %c0 = arith.constant 0 : index
    %c0_0 = arith.constant 0 : index
    %0 = vector.load %arg1[%c0, %c0_0] : memref<8x128xf32, #tpu.memory_space<vmem>>, vector<8x128xf32>
    %c0_1 = arith.constant 0 : index
    %c0_2 = arith.constant 0 : index
    %1 = vector.load %arg2[%c0_1, %c0_2] : memref<128x128xf32, #tpu.memory_space<vmem>>, vector<128x128xf32>
    %c0_3 = arith.constant 0 : index
    %c0_4 = arith.constant 0 : index
    %2 = vector.load %arg3[%c0_3, %c0_4] : memref<1x128xf32, #tpu.memory_space<vmem>>, vector<1x128xf32>
    %cst = arith.constant dense<0.000000e+00> : vector<8x128xf32>
    %3 = tpu.matmul %0, %1, %cst {dimension_numbers = #tpu.dot_dimension_numbers<[1], [0], [0], [1], [0, 0, 1, 1], [], []>} : vector<8x128xf32>, vector<128x128xf32>, vector<8x128xf32> -> vector<8x128xf32>
    %4 = vector.broadcast %2 : vector<1x128xf32> to vector<8x128xf32>
    %5 = arith.addf %3, %4 : vector<8x128xf32>
    %c0_5 = arith.constant 0 : index
    %c0_6 = arith.constant 0 : index
    %6 = vector.load %arg4[%c0_5, %c0_6] : memref<128x128xf32, #tpu.memory_space<vmem>>, vector<128x128xf32>
    %c0_7 = arith.constant 0 : index
    %c0_8 = arith.constant 0 : index
    %7 = vector.load %arg5[%c0_7, %c0_8] : memref<1x128xf32, #tpu.memory_space<vmem>>, vector<1x128xf32>
    %cst_9 = arith.constant dense<0.000000e+00> : vector<8x128xf32>
    %8 = tpu.matmul %5, %6, %cst_9 {dimension_numbers = #tpu.dot_dimension_numbers<[1], [0], [0], [1], [0, 0, 1, 1], [], []>} : vector<8x128xf32>, vector<128x128xf32>, vector<8x128xf32> -> vector<8x128xf32>
    %9 = vector.broadcast %7 : vector<1x128xf32> to vector<8x128xf32>
    %10 = arith.addf %8, %9 : vector<8x128xf32>
    %c0_10 = arith.constant 0 : index
    %c0_11 = arith.constant 0 : index
    %11 = vector.load %arg6[%c0_10, %c0_11] : memref<128x128xf32, #tpu.memory_space<vmem>>, vector<128x128xf32>
    %c0_12 = arith.constant 0 : index
    %c0_13 = arith.constant 0 : index
    %12 = vector.load %arg7[%c0_12, %c0_13] : memref<1x128xf32, #tpu.memory_space<vmem>>, vector<1x128xf32>
    %cst_14 = arith.constant dense<0.000000e+00> : vector<8x128xf32>
    %13 = tpu.matmul %10, %11, %cst_14 {dimension_numbers = #tpu.dot_dimension_numbers<[1], [0], [0], [1], [0, 0, 1, 1], [], []>} : vector<8x128xf32>, vector<128x128xf32>, vector<8x128xf32> -> vector<8x128xf32>
    %14 = vector.broadcast %12 : vector<1x128xf32> to vector<8x128xf32>
    %15 = arith.addf %13, %14 : vector<8x128xf32>
    %c0_15 = arith.constant 0 : index
    %c0_16 = arith.constant 0 : index
    %16 = vector.load %arg8[%c0_15, %c0_16] : memref<8x128xf32, #tpu.memory_space<vmem>>, vector<8x128xf32>
    tpu.vector_store %arg8[%c0_15, %c0_16], %15 {strides = array<i32>} : memref<8x128xf32, #tpu.memory_space<vmem>>, vector<8x128xf32>,
    return
  }
  func.func @transform_0(%arg0: i32) -> (i32, i32) {
    %c0_i32 = arith.constant 0 : i32
    %c0_i32_0 = arith.constant 0 : i32
    return %arg0, %c0_i32 : i32, i32
  }
  func.func @transform_1(%arg0: i32) -> (i32, i32) {
    %c0_i32 = arith.constant 0 : i32
    %c0_i32_0 = arith.constant 0 : i32
    %c0_i32_1 = arith.constant 0 : i32
    return %c0_i32, %c0_i32_0 : i32, i32
  }
  func.func @transform_2(%arg0: i32) -> (i32, i32) {
    %c0_i32 = arith.constant 0 : i32
    %c0_i32_0 = arith.constant 0 : i32
    %c0_i32_1 = arith.constant 0 : i32
    return %c0_i32, %c0_i32_0 : i32, i32
  }
  func.func @transform_3(%arg0: i32) -> (i32, i32) {
    %c0_i32 = arith.constant 0 : i32
    %c0_i32_0 = arith.constant 0 : i32
    %c0_i32_1 = arith.constant 0 : i32
    return %c0_i32, %c0_i32_0 : i32, i32
  }
  func.func @transform_4(%arg0: i32) -> (i32, i32) {
    %c0_i32 = arith.constant 0 : i32
    %c0_i32_0 = arith.constant 0 : i32
    %c0_i32_1 = arith.constant 0 : i32
    return %c0_i32, %c0_i32_0 : i32, i32
  }
  func.func @transform_5(%arg0: i32) -> (i32, i32) {
    %c0_i32 = arith.constant 0 : i32
    %c0_i32_0 = arith.constant 0 : i32
    %c0_i32_1 = arith.constant 0 : i32
    return %c0_i32, %c0_i32_0 : i32, i32
  }
  func.func @transform_6(%arg0: i32) -> (i32, i32) {
    %c0_i32 = arith.constant 0 : i32
    %c0_i32_0 = arith.constant 0 : i32
    %c0_i32_1 = arith.constant 0 : i32
    return %c0_i32, %c0_i32_0 : i32, i32
  }
  func.func @transform_7(%arg0: i32) -> (i32, i32) {
    %c0_i32 = arith.constant 0 : i32
    %c0_i32_0 = arith.constant 0 : i32
    return %arg0, %c0_i32 : i32, i32
  }
}

</mosaic_0001>

<llo_original>
// kernel: _forward_jit.1
$region0: #{_forward_jit.1}
  #allocation0 [shape = 'u32[]', space=smem, size = 0x4, offset = 0x4, fixed_abs, tag = 'smem constant byte address 0x4 - core index']
  #allocation1 [shape = 'u32[144,128]{1,0:T(1,128)}', space=vmem, size = 0x12000, scoped, tag = 'internal scratch']
  %s0 = inlined_call_operand.vmem [shape: f32[8,128], index: 0, kind: input, shape index: {}]
  %s1 = inlined_call_operand.hbm [shape: f32[128,128], index: 1, kind: input, shape index: {}]
  %s2 = inlined_call_operand.vmem [shape: f32[1,128], index: 2, kind: input, shape index: {}]
  %s3 = inlined_call_operand.hbm [shape: f32[128,128], index: 3, kind: input, shape index: {}]
  %s4 = inlined_call_operand.vmem [shape: f32[1,128], index: 4, kind: input, shape index: {}]
  %s5 = inlined_call_operand.hbm [shape: f32[128,128], index: 5, kind: input, shape index: {}]
  %s6 = inlined_call_operand.vmem [shape: f32[1,128], index: 6, kind: input, shape index: {}]
  %s7 = inlined_call_operand.hbm [shape: f32[8,128], index: 7, kind: output, shape index: {}]
  %s8 = sld [smem:[#allocation0]]
  $region50: #{_forward_jit.1} parent=0
    _
  %s10 = ssub.s32 1, %s8
  %s11 = scalar_select 0, %s10, %s8
  $region1: #{_forward_jit.1} parent=0
    #allocation2 [shape = 'u8[65536]{0}', space=vmem, size = 0x10000, scoped, tag = 'input window, operand 1, single buffered']
    #allocation3 [shape = 's32[1]{0}', space=sflag, size = 0x4, scoped, tag = 'scoped memory for _forward_jit.1']
    #allocation4 [shape = 's32[1]{0}', space=sflag, size = 0x4, scoped, tag = 'scoped memory for _forward_jit.1']
    #allocation5 [shape = 'u8[65536]{0}', space=vmem, size = 0x10000, scoped, tag = 'input window, operand 3, single buffered']
    #allocation6 [shape = 's32[1]{0}', space=sflag, size = 0x4, scoped, tag = 'scoped memory for _forward_jit.1']
    #allocation7 [shape = 'u8[65536]{0}', space=vmem, size = 0x10000, scoped, tag = 'input window, operand 5, single buffered']
    #allocation8 [shape = 'u8[4096]{0}', space=vmem, size = 0x1000, scoped, tag = 'output window, operand 0, single buffered']
    %12 = vsyncpa [#allocation3], 0
    %13 = vsyncpa [#allocation6], 0
    %14 = vsyncpa [#allocation4], 0
    // Predicated region
    $region2: #{_forward_jit.1} parent=1 // pred_check
      _
    $region3: #{_forward_jit.1} parent=1 // pred_check_branch
      %16 = sbr.rel (0) target = $region5
    $region4: #{_forward_jit.1} parent=1 // pred_region
      _
    $region5: #{_forward_jit.1} parent=1 // pred_fallthru
      _
    // Predicated region
    $region6: #{_forward_jit.1} parent=1 // pred_check
      _
    $region7: #{_forward_jit.1} parent=1 // pred_check_branch
      %18 = sbr.rel (0) target = $region9
    $region8: #{_forward_jit.1} parent=1 // pred_region
      %s20 = ssub.s32 2048, 2048
      %21 = vsyncadd [#allocation3], %s20
      %s22 = sshll.u32 [#allocation2], 4
      %s23 = int_to_ptr.vmem [resolvable:$true] %s22
      %28 = dma.hbm_to_vmem [thread:$0]  %s1, 2048, %s23, [#allocation3], 128, 128, 8
    $region9: #{_forward_jit.1} parent=1 // pred_fallthru
      _
    // Predicated region
    $region10: #{_forward_jit.1} parent=1 // pred_check
      _
    $region11: #{_forward_jit.1} parent=1 // pred_check_branch
      %30 = sbr.rel (0) target = $region13
    $region12: #{_forward_jit.1} parent=1 // pred_region
      _
    $region13: #{_forward_jit.1} parent=1 // pred_fallthru
      _
    // Predicated region
    $region14: #{_forward_jit.1} parent=1 // pred_check
      _
    $region15: #{_forward_jit.1} parent=1 // pred_check_branch
      %32 = sbr.rel (0) target = $region17
    $region16: #{_forward_jit.1} parent=1 // pred_region
      %s34 = ssub.s32 2048, 2048
      %35 = vsyncadd [#allocation6], %s34
      %s36 = sshll.u32 [#allocation5], 4
      %s37 = int_to_ptr.vmem [resolvable:$true] %s36
      %42 = dma.hbm_to_vmem [thread:$0]  %s3, 2048, %s37, [#allocation6], 128, 128, 8
    $region17: #{_forward_jit.1} parent=1 // pred_fallthru
      _
    // Predicated region
    $region18: #{_forward_jit.1} parent=1 // pred_check
      _
    $region19: #{_forward_jit.1} parent=1 // pred_check_branch
      %44 = sbr.rel (0) target = $region21
    $region20: #{_forward_jit.1} parent=1 // pred_region
      _
    $region21: #{_forward_jit.1} parent=1 // pred_fallthru
      _
    // Predicated region
    $region22: #{_forward_jit.1} parent=1 // pred_check
      _
    $region23: #{_forward_jit.1} parent=1 // pred_check_branch
      %46 = sbr.rel (0) target = $region25
    $region24: #{_forward_jit.1} parent=1 // pred_region
      %s48 = ssub.s32 2048, 2048
      %49 = vsyncadd [#allocation6], %s48
      %s50 = sshll.u32 [#allocation7], 4
      %s51 = int_to_ptr.vmem [resolvable:$true] %s50
      %56 = dma.hbm_to_vmem [thread:$0]  %s5, 2048, %s51, [#allocation6], 128, 128, 8
    $region25: #{_forward_jit.1} parent=1 // pred_fallthru
      _
    // Predicated region
    $region26: #{_forward_jit.1} parent=1 // pred_check
      _
    $region27: #{_forward_jit.1} parent=1 // pred_check_branch
      %58 = sbr.rel (0) target = $region29
    $region28: #{_forward_jit.1} parent=1 // pred_region
      _
    $region29: #{_forward_jit.1} parent=1 // pred_fallthru
      _
    // Predicated region
    $region30: #{_forward_jit.1} parent=1 // pred_check
      _
    $region31: #{_forward_jit.1} parent=1 // pred_check_branch
      %60 = sbr.rel (0) target = $region33
    $region32: #{_forward_jit.1} parent=1 // pred_region
      %61 = dma.done [#allocation3], 2048
    $region33: #{_forward_jit.1} parent=1 // pred_fallthru
      _
    // Predicated region
    $region34: #{_forward_jit.1} parent=1 // pred_check
      _
    $region35: #{_forward_jit.1} parent=1 // pred_check_branch
      %63 = sbr.rel (0) target = $region37
    $region36: #{_forward_jit.1} parent=1 // pred_region
      %64 = dma.done [#allocation6], 2048
    $region37: #{_forward_jit.1} parent=1 // pred_fallthru
      _
    // Predicated region
    $region38: #{_forward_jit.1} parent=1 // pred_check
      _
    $region39: #{_forward_jit.1} parent=1 // pred_check_branch
      %66 = sbr.rel (0) target = $region41
    $region40: #{_forward_jit.1} parent=1 // pred_region
      %67 = dma.done [#allocation6], 2048
    $region41: #{_forward_jit.1} parent=1 // pred_fallthru
      _
    %v68 = vld [vmem:[%s0] sm:$0xff]
    %v69 = vld [vmem:[#allocation2] sm:$0xff]
    %v70 = vld [vmem:[#allocation2 + $0x8] sm:$0xff]
    %v71 = vld [vmem:[#allocation2 + $0x10] sm:$0xff]
    %v72 = vld [vmem:[#allocation2 + $0x18] sm:$0xff]
    %v73 = vld [vmem:[#allocation2 + $0x20] sm:$0xff]
    %v74 = vld [vmem:[#allocation2 + $0x28] sm:$0xff]
    %v75 = vld [vmem:[#allocation2 + $0x30] sm:$0xff]
    %v76 = vld [vmem:[#allocation2 + $0x38] sm:$0xff]
    %v77 = vld [vmem:[#allocation2 + $0x40] sm:$0xff]
    %v78 = vld [vmem:[#allocation2 + $0x48] sm:$0xff]
    %v79 = vld [vmem:[#allocation2 + $0x50] sm:$0xff]
    %v80 = vld [vmem:[#allocation2 + $0x58] sm:$0xff]
    %v81 = vld [vmem:[#allocation2 + $0x60] sm:$0xff]
    %v82 = vld [vmem:[#allocation2 + $0x68] sm:$0xff]
    %v83 = vld [vmem:[#allocation2 + $0x70] sm:$0xff]
    %v84 = vld [vmem:[#allocation2 + $0x78] sm:$0xff]
    %v85 = vld [vmem:[%s2] sm:$0x1]
    %v87 = vlaneseq
    %v88 = vshrl.u32 %v87, 7
    %v89 = vsub.s32 0, %v88
    %v90 = vrot.slane %v85, %v89
    %92 = vmatprep.subr.mxu0 0.0
    %93 = vmatpush1.msra.mxu0 %v69
    %94 = vmatprep.subr.mxu0 0.0
    %95 = vmatpush1.msra.mxu0 %v70
    %96 = vmatprep.subr.mxu0 0.0
    %97 = vmatpush1.msra.mxu0 %v71
    %98 = vmatprep.subr.mxu0 0.0
    %99 = vmatpush1.msra.mxu0 %v72
    %100 = vmatprep.subr.mxu0 0.0
    %101 = vmatpush1.msra.mxu0 %v73
    %102 = vmatprep.subr.mxu0 0.0
    %103 = vmatpush1.msra.mxu0 %v74
    %104 = vmatprep.subr.mxu0 0.0
    %105 = vmatpush1.msra.mxu0 %v75
    %106 = vmatprep.subr.mxu0 0.0
    %107 = vmatpush1.msra.mxu0 %v76
    %108 = vmatprep.subr.mxu0 0.0
    %109 = vmatpush1.msra.mxu0 %v77
    %110 = vmatprep.subr.mxu0 0.0
    %111 = vmatpush1.msra.mxu0 %v78
    %112 = vmatprep.subr.mxu0 0.0
    %113 = vmatpush1.msra.mxu0 %v79
    %114 = vmatprep.subr.mxu0 0.0
    %115 = vmatpush1.msra.mxu0 %v80
    %116 = vmatprep.subr.mxu0 0.0
    %117 = vmatpush1.msra.mxu0 %v81
    %118 = vmatprep.subr.mxu0 0.0
    %119 = vmatpush1.msra.mxu0 %v82
    %120 = vmatprep.subr.mxu0 0.0
    %121 = vmatpush1.msra.mxu0 %v83
    %122 = vmatprep.subr.mxu0 0.0
    %123 = vmatpush1.msra.mxu0 %v84
    %124 = vmatprep.subr.mxu0 0.0
    %125 = vmatpush1.msra.mxu0 0.0
    %126 = vmatprep.subr.mxu0 0.0
    %127 = vmatpush1.msra.mxu0 0.0
    %128 = vmatprep.subr.mxu0 0.0
    %129 = vmatpush1.msra.mxu0 0.0
    %130 = vmatprep.subr.mxu0 0.0
    %131 = vmatpush1.msra.mxu0 0.0
    %132 = vmatprep.subr.mxu0 0.0
    %133 = vmatpush1.msra.mxu0 0.0
    %134 = vmatprep.subr.mxu0 0.0
    %135 = vmatpush1.msra.mxu0 0.0
    %136 = vmatprep.subr.mxu0 0.0
    %137 = vmatpush1.msra.mxu0 0.0
    %138 = vmatprep.subr.mxu0 0.0
    %139 = vmatpush1.msra.mxu0 0.0
    %140 = vmatprep.subr.mxu0 0.0
    %141 = vmatpush1.msra.mxu0 0.0
    %142 = vmatprep.subr.mxu0 0.0
    %143 = vmatpush1.msra.mxu0 0.0
    %144 = vmatprep.subr.mxu0 0.0
    %145 = vmatpush1.msra.mxu0 0.0
    %146 = vmatprep.subr.mxu0 0.0
    %147 = vmatpush1.msra.mxu0 0.0
    %148 = vmatprep.subr.mxu0 0.0
    %149 = vmatpush1.msra.mxu0 0.0
    %150 = vmatprep.subr.mxu0 0.0
    %151 = vmatpush1.msra.mxu0 0.0
    %152 = vmatprep.subr.mxu0 0.0
    %153 = vmatpush1.msra.mxu0 0.0
    %154 = vmatprep.subr.mxu0 0.0
    %155 = vmatpush1.msra.mxu0 0.0
    %156 = vmatprep.mubr.f32.mxu0 0.0
    %157 = vmatmul.mubr.f32.gmra.mrb[0].mxu0 %v68
    %v158 = vpop.f32.mrb[0].mxu0
    %v159 = vadd.f32 %v90, %v158
    %v160 = vpop.f32.mrb[0].mxu0
    %161 = vdwg.mxu0
    %v162 = vld [vmem:[#allocation5] sm:$0xff]
    %v163 = vld [vmem:[#allocation5 + $0x8] sm:$0xff]
    %v164 = vld [vmem:[#allocation5 + $0x10] sm:$0xff]
    %v165 = vld [vmem:[#allocation5 + $0x18] sm:$0xff]
    %v166 = vld [vmem:[#allocation5 + $0x20] sm:$0xff]
    %v167 = vld [vmem:[#allocation5 + $0x28] sm:$0xff]
    %v168 = vld [vmem:[#allocation5 + $0x30] sm:$0xff]
    %v169 = vld [vmem:[#allocation5 + $0x38] sm:$0xff]
    %v170 = vld [vmem:[#allocation5 + $0x40] sm:$0xff]
    %v171 = vld [vmem:[#allocation5 + $0x48] sm:$0xff]
    %v172 = vld [vmem:[#allocation5 + $0x50] sm:$0xff]
    %v173 = vld [vmem:[#allocation5 + $0x58] sm:$0xff]
    %v174 = vld [vmem:[#allocation5 + $0x60] sm:$0xff]
    %v175 = vld [vmem:[#allocation5 + $0x68] sm:$0xff]
    %v176 = vld [vmem:[#allocation5 + $0x70] sm:$0xff]
    %v177 = vld [vmem:[#allocation5 + $0x78] sm:$0xff]
    %v178 = vld [vmem:[%s4] sm:$0x1]
    %v180 = vlaneseq
    %v181 = vshrl.u32 %v180, 7
    %v182 = vsub.s32 0, %v181
    %v183 = vrot.slane %v178, %v182
    %185 = vmatprep.subr.mxu0 0.0
    %186 = vmatpush1.msra.mxu0 %v162
    %187 = vmatprep.subr.mxu0 0.0
    %188 = vmatpush1.msra.mxu0 %v163
    %189 = vmatprep.subr.mxu0 0.0
    %190 = vmatpush1.msra.mxu0 %v164
    %191 = vmatprep.subr.mxu0 0.0
    %192 = vmatpush1.msra.mxu0 %v165
    %193 = vmatprep.subr.mxu0 0.0
    %194 = vmatpush1.msra.mxu0 %v166
    %195 = vmatprep.subr.mxu0 0.0
    %196 = vmatpush1.msra.mxu0 %v167
    %197 = vmatprep.subr.mxu0 0.0
    %198 = vmatpush1.msra.mxu0 %v168
    %199 = vmatprep.subr.mxu0 0.0
    %200 = vmatpush1.msra.mxu0 %v169
    %201 = vmatprep.subr.mxu0 0.0
    %202 = vmatpush1.msra.mxu0 %v170
    %203 = vmatprep.subr.mxu0 0.0
    %204 = vmatpush1.msra.mxu0 %v171
    %205 = vmatprep.subr.mxu0 0.0
    %206 = vmatpush1.msra.mxu0 %v172
    %207 = vmatprep.subr.mxu0 0.0
    %208 = vmatpush1.msra.mxu0 %v173
    %209 = vmatprep.subr.mxu0 0.0
    %210 = vmatpush1.msra.mxu0 %v174
    %211 = vmatprep.subr.mxu0 0.0
    %212 = vmatpush1.msra.mxu0 %v175
    %213 = vmatprep.subr.mxu0 0.0
    %214 = vmatpush1.msra.mxu0 %v176
    %215 = vmatprep.subr.mxu0 0.0
    %216 = vmatpush1.msra.mxu0 %v177
    %217 = vmatprep.subr.mxu0 0.0
    %218 = vmatpush1.msra.mxu0 0.0
    %219 = vmatprep.subr.mxu0 0.0
    %220 = vmatpush1.msra.mxu0 0.0
    %221 = vmatprep.subr.mxu0 0.0
    %222 = vmatpush1.msra.mxu0 0.0
    %223 = vmatprep.subr.mxu0 0.0
    %224 = vmatpush1.msra.mxu0 0.0
    %225 = vmatprep.subr.mxu0 0.0
    %226 = vmatpush1.msra.mxu0 0.0
    %227 = vmatprep.subr.mxu0 0.0
    %228 = vmatpush1.msra.mxu0 0.0
    %229 = vmatprep.subr.mxu0 0.0
    %230 = vmatpush1.msra.mxu0 0.0
    %231 = vmatprep.subr.mxu0 0.0
    %232 = vmatpush1.msra.mxu0 0.0
    %233 = vmatprep.subr.mxu0 0.0
    %234 = vmatpush1.msra.mxu0 0.0
    %235 = vmatprep.subr.mxu0 0.0
    %236 = vmatpush1.msra.mxu0 0.0
    %237 = vmatprep.subr.mxu0 0.0
    %238 = vmatpush1.msra.mxu0 0.0
    %239 = vmatprep.subr.mxu0 0.0
    %240 = vmatpush1.msra.mxu0 0.0
    %241 = vmatprep.subr.mxu0 0.0
    %242 = vmatpush1.msra.mxu0 0.0
    %243 = vmatprep.subr.mxu0 0.0
    %244 = vmatpush1.msra.mxu0 0.0
    %245 = vmatprep.subr.mxu0 0.0
    %246 = vmatpush1.msra.mxu0 0.0
    %247 = vmatprep.subr.mxu0 0.0
    %248 = vmatpush1.msra.mxu0 0.0
    %249 = vmatprep.mubr.f32.mxu0 0.0
    %250 = vmatmul.mubr.f32.gmra.mrb[0].mxu0 %v159
    %v251 = vpop.f32.mrb[0].mxu0
    %v252 = vadd.f32 %v183, %v251
    %v253 = vpop.f32.mrb[0].mxu0
    %254 = vdwg.mxu0
    %v255 = vld [vmem:[#allocation7] sm:$0xff]
    %v256 = vld [vmem:[#allocation7 + $0x8] sm:$0xff]
    %v257 = vld [vmem:[#allocation7 + $0x10] sm:$0xff]
    %v258 = vld [vmem:[#allocation7 + $0x18] sm:$0xff]
    %v259 = vld [vmem:[#allocation7 + $0x20] sm:$0xff]
    %v260 = vld [vmem:[#allocation7 + $0x28] sm:$0xff]
    %v261 = vld [vmem:[#allocation7 + $0x30] sm:$0xff]
    %v262 = vld [vmem:[#allocation7 + $0x38] sm:$0xff]
    %v263 = vld [vmem:[#allocation7 + $0x40] sm:$0xff]
    %v264 = vld [vmem:[#allocation7 + $0x48] sm:$0xff]
    %v265 = vld [vmem:[#allocation7 + $0x50] sm:$0xff]
    %v266 = vld [vmem:[#allocation7 + $0x58] sm:$0xff]
    %v267 = vld [vmem:[#allocation7 + $0x60] sm:$0xff]
    %v268 = vld [vmem:[#allocation7 + $0x68] sm:$0xff]
    %v269 = vld [vmem:[#allocation7 + $0x70] sm:$0xff]
    %v270 = vld [vmem:[#allocation7 + $0x78] sm:$0xff]
    %v271 = vld [vmem:[%s6] sm:$0x1]
    %v273 = vlaneseq
    %v274 = vshrl.u32 %v273, 7
    %v275 = vsub.s32 0, %v274
    %v276 = vrot.slane %v271, %v275
    %278 = vmatprep.subr.mxu0 0.0
    %279 = vmatpush1.msra.mxu0 %v255
    %280 = vmatprep.subr.mxu0 0.0
    %281 = vmatpush1.msra.mxu0 %v256
    %282 = vmatprep.subr.mxu0 0.0
    %283 = vmatpush1.msra.mxu0 %v257
    %284 = vmatprep.subr.mxu0 0.0
    %285 = vmatpush1.msra.mxu0 %v258
    %286 = vmatprep.subr.mxu0 0.0
    %287 = vmatpush1.msra.mxu0 %v259
    %288 = vmatprep.subr.mxu0 0.0
    %289 = vmatpush1.msra.mxu0 %v260
    %290 = vmatprep.subr.mxu0 0.0
    %291 = vmatpush1.msra.mxu0 %v261
    %292 = vmatprep.subr.mxu0 0.0
    %293 = vmatpush1.msra.mxu0 %v262
    %294 = vmatprep.subr.mxu0 0.0
    %295 = vmatpush1.msra.mxu0 %v263
    %296 = vmatprep.subr.mxu0 0.0
    %297 = vmatpush1.msra.mxu0 %v264
    %298 = vmatprep.subr.mxu0 0.0
    %299 = vmatpush1.msra.mxu0 %v265
    %300 = vmatprep.subr.mxu0 0.0
    %301 = vmatpush1.msra.mxu0 %v266
    %302 = vmatprep.subr.mxu0 0.0
    %303 = vmatpush1.msra.mxu0 %v267
    %304 = vmatprep.subr.mxu0 0.0
    %305 = vmatpush1.msra.mxu0 %v268
    %306 = vmatprep.subr.mxu0 0.0
    %307 = vmatpush1.msra.mxu0 %v269
    %308 = vmatprep.subr.mxu0 0.0
    %309 = vmatpush1.msra.mxu0 %v270
    %310 = vmatprep.subr.mxu0 0.0
    %311 = vmatpush1.msra.mxu0 0.0
    %312 = vmatprep.subr.mxu0 0.0
    %313 = vmatpush1.msra.mxu0 0.0
    %314 = vmatprep.subr.mxu0 0.0
    %315 = vmatpush1.msra.mxu0 0.0
    %316 = vmatprep.subr.mxu0 0.0
    %317 = vmatpush1.msra.mxu0 0.0
    %318 = vmatprep.subr.mxu0 0.0
    %319 = vmatpush1.msra.mxu0 0.0
    %320 = vmatprep.subr.mxu0 0.0
    %321 = vmatpush1.msra.mxu0 0.0
    %322 = vmatprep.subr.mxu0 0.0
    %323 = vmatpush1.msra.mxu0 0.0
    %324 = vmatprep.subr.mxu0 0.0
    %325 = vmatpush1.msra.mxu0 0.0
    %326 = vmatprep.subr.mxu0 0.0
    %327 = vmatpush1.msra.mxu0 0.0
    %328 = vmatprep.subr.mxu0 0.0
    %329 = vmatpush1.msra.mxu0 0.0
    %330 = vmatprep.subr.mxu0 0.0
    %331 = vmatpush1.msra.mxu0 0.0
    %332 = vmatprep.subr.mxu0 0.0
    %333 = vmatpush1.msra.mxu0 0.0
    %334 = vmatprep.subr.mxu0 0.0
    %335 = vmatpush1.msra.mxu0 0.0
    %336 = vmatprep.subr.mxu0 0.0
    %337 = vmatpush1.msra.mxu0 0.0
    %338 = vmatprep.subr.mxu0 0.0
    %339 = vmatpush1.msra.mxu0 0.0
    %340 = vmatprep.subr.mxu0 0.0
    %341 = vmatpush1.msra.mxu0 0.0
    %342 = vmatprep.mubr.f32.mxu0 0.0
    %343 = vmatmul.mubr.f32.gmra.mrb[0].mxu0 %v252
    %v344 = vpop.f32.mrb[0].mxu0
    %v345 = vadd.f32 %v276, %v344
    %v346 = vpop.f32.mrb[0].mxu0
    %347 = vdwg.mxu0
    %348 = vst [vmem:[#allocation8] sm:$0xff] %v345
    // Predicated region
    $region42: #{_forward_jit.1} parent=1 // pred_check
      _
    $region43: #{_forward_jit.1} parent=1 // pred_check_branch
      %350 = sbr.rel (0) target = $region45
    $region44: #{_forward_jit.1} parent=1 // pred_region
      %s352 = ssub.s32 128, 128
      %353 = vsyncadd [#allocation4], %s352
      %s355 = sshll.u32 [#allocation8], 4
      %s356 = int_to_ptr.vmem [resolvable:$true] %s355
      %358 = dma.vmem_to_hbm [thread:$0]  %s356, 128, %s7, [#allocation4]
    $region45: #{_forward_jit.1} parent=1 // pred_fallthru
      _
    // Predicated region
    $region46: #{_forward_jit.1} parent=1 // pred_check
      _
    $region47: #{_forward_jit.1} parent=1 // pred_check_branch
      %360 = sbr.rel (0) target = $region49
    $region48: #{_forward_jit.1} parent=1 // pred_region
      %361 = dma.done [#allocation4], 128
    $region49: #{_forward_jit.1} parent=1 // pred_fallthru
      _
    %362 = vsyncpa [#allocation3], 1
    %363 = vsyncpa [#allocation6], 1
    %364 = vsyncpa [#allocation4], 1

</llo_original>
